<compile_context>
chip_gen: v7x
topology: tpu7x:2x2x1
jax: 0.10.0
libtpu: 0.0.40
codegen_flags: <defaults>
</compile_context>

<pallas_src>
import jax
import jax.numpy as jnp
from jax import lax
from jax.experimental import pallas as pl
from jax.experimental.pallas import tpu as pltpu


def _make_lstm_kernel(seq_len, input_size, hidden_size, output_size):
    """Builds the single-invocation kernel: full LSTM recurrence + linear head."""
    H, O = hidden_size, output_size

    # Static row offsets into the packed parameter slab.
    ROW_WHH = 0                      # rows [0, H)            : W_hh^T  (H, 4H), g-block x2
    ROW_WIH = H                      # rows [H, H+in)         : W_ih^T  (in, 4H), g-block x2
    ROW_B = H + input_size           # row                    : b_ih + b_hh (1, 4H), g-slice x2
    ROW_WLIN = ROW_B + 1             # rows [.., ..+O)        : W_lin   (O, H) in first H lanes
    ROW_BLIN = ROW_WLIN + O          # rows [.., ..+O)        : b_lin   in lane 0

    def kernel(x_ref, slab_ref, out_ref):
        # ---- one-time work, off the serial critical path -------------------
        # Loop-invariant recurrent weight held in vregs, cast once to bf16 so
        # the per-step dot is single-pass on the MXU (accumulation stays f32).
        whh_bf = slab_ref[ROW_WHH:ROW_WHH + H, :].astype(jnp.bfloat16)
        wih = slab_ref[ROW_WIH:ROW_WIH + input_size, :]
        bias = slab_ref[ROW_B:ROW_B + 1, :]

        # Input projection + bias for ALL time steps at once.
        x = x_ref[...]                                           # (S, in)
        if input_size == 1:
            # (S,1) * (1,4H) broadcast-multiply on the VPU; no MXU stream.
            xw = x * wih + bias
        else:
            xw = jnp.dot(x, wih, preferred_element_type=jnp.float32) + bias

        # Hoist the per-step row extracts off the recurrence critical chain.
        xw_rows = [xw[t:t + 1, :] for t in range(seq_len)]

        h = jnp.zeros((1, H), jnp.float32)
        c = jnp.zeros((1, H), jnp.float32)

        # ---- serial recurrence, fully unrolled (seq_len is a Python int) ---
        for t in range(seq_len):
            gates = xw_rows[t] + jnp.dot(
                h.astype(jnp.bfloat16), whh_bf,
                preferred_element_type=jnp.float32)              # (1, 4H) f32
            # Single fused sigmoid across all four gate blocks.  The g block
            # was pre-scaled by 2 so tanh(z) = 2*sigmoid(2z) - 1.
            s = jax.nn.sigmoid(gates)
            i = s[:, 0 * H:1 * H]
            f = s[:, 1 * H:2 * H]
            g = 2.0 * s[:, 2 * H:3 * H] - 1.0
            o = s[:, 3 * H:4 * H]
            c = f * c + i * g
            h = o * jnp.tanh(c)

        # ---- linear head: O is tiny -> VPU multiply + lane reduce ----------
        wlin = slab_ref[ROW_WLIN:ROW_WLIN + O, 0:H]              # (O, H)
        blin = slab_ref[ROW_BLIN:ROW_BLIN + O, 0:1]              # (O, 1)
        head = jnp.sum(wlin * h, axis=-1, keepdims=True) + blin  # (O, 1)
        # Lane-dense, unmasked store; wrapper reads lane 0.
        out_ref[...] = jnp.broadcast_to(head, out_ref.shape)

    return kernel


def make_lstm_forward(seq_len, input_size, hidden_size, output_size):
    """Returns a jitted callable mirroring LSTM.forward(input_seq) -> (output_size,)."""
    kernel = _make_lstm_kernel(seq_len, input_size, hidden_size, output_size)

    @jax.jit
    def forward(input_seq, param_slab):
        # input_seq.view(len(input_seq), 1, -1) with batch=1 -> (seq_len, input_size)
        x = input_seq.reshape(seq_len, input_size).astype(jnp.float32)
        out = pl.pallas_call(
            kernel,
            out_shape=jax.ShapeDtypeStruct((output_size, 128), jnp.float32),
            in_specs=[pl.BlockSpec(memory_space=pltpu.MemorySpace.VMEM)] * 2,
            out_specs=pl.BlockSpec(memory_space=pltpu.MemorySpace.VMEM),
        )(x, param_slab)
        return out[:, 0]                                         # (output_size,)

    return forward


def prepare_kernel_params(raw_params):
    """Pack all parameters into ONE lane-dense (rows, 128) f32 slab.

    Layout (rows):
      [0, H)               W_hh^T   (g-gate block pre-scaled by 2)
      [H, H+in)            W_ih^T   (g-gate block pre-scaled by 2)
      H+in                 b_ih + b_hh (g-slice pre-scaled by 2)
      next O rows          W_lin    (first H lanes)
      next O rows          b_lin    (lane 0)
    Row count padded to a multiple of 8; lane count padded to a multiple of 128.
    """
    w_ih, w_hh, b_ih, b_hh, w_lin, b_lin = raw_params
    four_h, input_size = w_ih.shape
    H = four_h // 4
    lanes = max(128, ((four_h + 127) // 128) * 128)

    # g-gate prescale enabling the single-sigmoid fusion tanh(z) = 2*sigmoid(2z) - 1.
    scale = jnp.ones((four_h,), jnp.float32).at[2 * H:3 * H].set(2.0)
    whh_t = (w_hh * scale[:, None]).T                 # (H, 4H)
    wih_t = (w_ih * scale[:, None]).T                 # (input_size, 4H)
    bias = ((b_ih + b_hh) * scale)[None, :]           # (1, 4H)

    def pad_to_lanes(a):
        a = a.astype(jnp.float32)
        return jnp.pad(a, ((0, 0), (0, lanes - a.shape[1])))

    slab = jnp.concatenate(
        [
            pad_to_lanes(whh_t),
            pad_to_lanes(wih_t),
            pad_to_lanes(bias),
            pad_to_lanes(w_lin),
            pad_to_lanes(b_lin[:, None]),
        ],
        axis=0,
    )
    pad_rows = (-slab.shape[0]) % 8
    if pad_rows:
        slab = jnp.pad(slab, ((0, pad_rows), (0, 0)))
    return slab


def lstm_forward_ref(input_seq, raw_params):
    """Pure-JAX f32 reference matching PyTorch nn.LSTM (gate order i,f,g,o) + Linear."""
    w_ih, w_hh, b_ih, b_hh, w_lin, b_lin = raw_params
    H = w_hh.shape[1]
    input_size = w_ih.shape[1]
    x = input_seq.reshape(-1, input_size).astype(jnp.float32)

    def step(carry, x_t):
        h, c = carry
        gates = x_t[None, :] @ w_ih.T + h @ w_hh.T + b_ih + b_hh
        i = jax.nn.sigmoid(gates[:, 0 * H:1 * H])
        f = jax.nn.sigmoid(gates[:, 1 * H:2 * H])
        g = jnp.tanh(gates[:, 2 * H:3 * H])
        o = jax.nn.sigmoid(gates[:, 3 * H:4 * H])
        c = f * c + i * g
        h = o * jnp.tanh(c)
        return (h, c), h

    (h_last, _), _ = lax.scan(
        step, (jnp.zeros((1, H), jnp.float32), jnp.zeros((1, H), jnp.float32)), x
    )
    return (h_last @ w_lin.T + b_lin).reshape(-1)


def init_raw_params(key, input_size, hidden, output_size):
    """Deterministic synthetic parameters in PyTorch nn.LSTM / nn.Linear layout."""
    k = jax.random.split(key, 6)
    s = 1.0 / jnp.sqrt(hidden)
    w_ih = jax.random.uniform(k[0], (4 * hidden, input_size), jnp.float32, -s, s)
    w_hh = jax.random.uniform(k[1], (4 * hidden, hidden), jnp.float32, -s, s)
    b_ih = jax.random.uniform(k[2], (4 * hidden,), jnp.float32, -s, s)
    b_hh = jax.random.uniform(k[3], (4 * hidden,), jnp.float32, -s, s)
    w_lin = jax.random.uniform(k[4], (output_size, hidden), jnp.float32, -s, s)
    b_lin = jax.random.uniform(k[5], (output_size,), jnp.float32, -s, s)
    return w_ih, w_hh, b_ih, b_hh, w_lin, b_lin


if __name__ == "__main__":
    seq_len, input_size, hidden, output_size = 8, 1, 32, 1

    key = jax.random.PRNGKey(0)
    k_x, k_p = jax.random.split(key)
    input_seq = jax.random.normal(k_x, (seq_len,), jnp.float32)

    raw_params = init_raw_params(k_p, input_size, hidden, output_size)
    param_slab = prepare_kernel_params(raw_params)

    forward = make_lstm_forward(seq_len, input_size, hidden, output_size)
    out = jax.block_until_ready(forward(input_seq, param_slab))
    ref = jax.block_until_ready(lstm_forward_ref(input_seq, raw_params))

    assert out.shape == (output_size,)
    # Recurrent matmul runs in bf16 on the MXU (f32 accumulation), so the check
    # against the pure-f32 reference uses a correspondingly looser tolerance.
    assert jnp.allclose(out, ref, atol=2e-2, rtol=2e-2), (out, ref)
    print("KERNEL_OK")
</pallas_src>

<mosaic_0001>
module attributes {stable_mosaic.version = 11 : i64} {
  func.func @kernel(%arg0: memref<8x1xf32, #tpu.memory_space<vmem>>, %arg1: memref<40x128xf32, #tpu.memory_space<vmem>>, %arg2: memref<1x128xf32, #tpu.memory_space<vmem>>) attributes {dimension_semantics = [], scalar_prefetch = 0 : i64, scratch_operands = 0 : i64, tpu.core_type = #tpu.core_type<tc>} {
    %c0 = arith.constant 0 : index
    %c0_0 = arith.constant 0 : index
    %0 = vector.load %arg1[%c0, %c0_0] : memref<40x128xf32, #tpu.memory_space<vmem>>, vector<32x128xf32>
    %1 = arith.truncf %0 : vector<32x128xf32> to vector<32x128xbf16>
    %c32 = arith.constant 32 : index
    %c0_1 = arith.constant 0 : index
    %2 = vector.load %arg1[%c32, %c0_1] : memref<40x128xf32, #tpu.memory_space<vmem>>, vector<1x128xf32>
    %c33 = arith.constant 33 : index
    %c0_2 = arith.constant 0 : index
    %3 = vector.load %arg1[%c33, %c0_2] : memref<40x128xf32, #tpu.memory_space<vmem>>, vector<1x128xf32>
    %c0_3 = arith.constant 0 : index
    %c0_4 = arith.constant 0 : index
    %4 = vector.load %arg0[%c0_3, %c0_4] : memref<8x1xf32, #tpu.memory_space<vmem>>, vector<8x1xf32>
    %5 = vector.broadcast %4 : vector<8x1xf32> to vector<8x128xf32>
    %6 = vector.broadcast %2 : vector<1x128xf32> to vector<8x128xf32>
    %7 = arith.mulf %5, %6 : vector<8x128xf32>
    %8 = vector.broadcast %3 : vector<1x128xf32> to vector<8x128xf32>
    %9 = arith.addf %7, %8 : vector<8x128xf32>
    %10 = vector.extract_strided_slice %9 {offsets = [0, 0], sizes = [1, 128], strides = [1, 1]} : vector<8x128xf32> to vector<1x128xf32>
    %11 = vector.extract_strided_slice %9 {offsets = [1, 0], sizes = [1, 128], strides = [1, 1]} : vector<8x128xf32> to vector<1x128xf32>
    %12 = vector.extract_strided_slice %9 {offsets = [2, 0], sizes = [1, 128], strides = [1, 1]} : vector<8x128xf32> to vector<1x128xf32>
    %13 = vector.extract_strided_slice %9 {offsets = [3, 0], sizes = [1, 128], strides = [1, 1]} : vector<8x128xf32> to vector<1x128xf32>
    %14 = vector.extract_strided_slice %9 {offsets = [4, 0], sizes = [1, 128], strides = [1, 1]} : vector<8x128xf32> to vector<1x128xf32>
    %15 = vector.extract_strided_slice %9 {offsets = [5, 0], sizes = [1, 128], strides = [1, 1]} : vector<8x128xf32> to vector<1x128xf32>
    %16 = vector.extract_strided_slice %9 {offsets = [6, 0], sizes = [1, 128], strides = [1, 1]} : vector<8x128xf32> to vector<1x128xf32>
    %17 = vector.extract_strided_slice %9 {offsets = [7, 0], sizes = [1, 128], strides = [1, 1]} : vector<8x128xf32> to vector<1x128xf32>
    %cst = arith.constant 0.000000e+00 : f32
    %18 = vector.broadcast %cst : f32 to vector<1x32xf32>
    %cst_5 = arith.constant 0.000000e+00 : f32
    %19 = vector.broadcast %cst_5 : f32 to vector<1x32xf32>
    %20 = arith.truncf %18 : vector<1x32xf32> to vector<1x32xbf16>
    %cst_6 = arith.constant dense<0.000000e+00> : vector<1x128xf32>
    %21 = tpu.matmul %20, %1, %cst_6 {dimension_numbers = #tpu.dot_dimension_numbers<[1], [0], [0], [1], [0, 0, 1, 1], [], []>} : vector<1x32xbf16>, vector<32x128xbf16>, vector<1x128xf32> -> vector<1x128xf32>
    %22 = arith.addf %10, %21 : vector<1x128xf32>
    %23 = arith.negf %22 : vector<1x128xf32>
    %24 = math.exp %23 : vector<1x128xf32>
    %cst_7 = arith.constant 1.000000e+00 : f32
    %25 = vector.broadcast %cst_7 : f32 to vector<1x128xf32>
    %26 = arith.addf %25, %24 : vector<1x128xf32>
    %27 = arith.divf %25, %26 : vector<1x128xf32>
    %28 = vector.extract_strided_slice %27 {offsets = [0, 0], sizes = [1, 32], strides = [1, 1]} : vector<1x128xf32> to vector<1x32xf32>
    %29 = vector.extract_strided_slice %27 {offsets = [0, 32], sizes = [1, 32], strides = [1, 1]} : vector<1x128xf32> to vector<1x32xf32>
    %30 = vector.extract_strided_slice %27 {offsets = [0, 64], sizes = [1, 32], strides = [1, 1]} : vector<1x128xf32> to vector<1x32xf32>
    %cst_8 = arith.constant 2.000000e+00 : f32
    %31 = vector.broadcast %cst_8 : f32 to vector<1x32xf32>
    %32 = arith.mulf %31, %30 : vector<1x32xf32>
    %cst_9 = arith.constant 1.000000e+00 : f32
    %33 = vector.broadcast %cst_9 : f32 to vector<1x32xf32>
    %34 = arith.subf %32, %33 : vector<1x32xf32>
    %35 = vector.extract_strided_slice %27 {offsets = [0, 96], sizes = [1, 32], strides = [1, 1]} : vector<1x128xf32> to vector<1x32xf32>
    %36 = arith.mulf %29, %19 : vector<1x32xf32>
    %37 = arith.mulf %28, %34 : vector<1x32xf32>
    %38 = arith.addf %36, %37 : vector<1x32xf32>
    %39 = math.tanh %38 : vector<1x32xf32>
    %40 = arith.mulf %35, %39 : vector<1x32xf32>
    %41 = arith.truncf %40 : vector<1x32xf32> to vector<1x32xbf16>
    %cst_10 = arith.constant dense<0.000000e+00> : vector<1x128xf32>
    %42 = tpu.matmul %41, %1, %cst_10 {dimension_numbers = #tpu.dot_dimension_numbers<[1], [0], [0], [1], [0, 0, 1, 1], [], []>} : vector<1x32xbf16>, vector<32x128xbf16>, vector<1x128xf32> -> vector<1x128xf32>
    %43 = arith.addf %11, %42 : vector<1x128xf32>
    %44 = arith.negf %43 : vector<1x128xf32>
    %45 = math.exp %44 : vector<1x128xf32>
    %cst_11 = arith.constant 1.000000e+00 : f32
    %46 = vector.broadcast %cst_11 : f32 to vector<1x128xf32>
    %47 = arith.addf %46, %45 : vector<1x128xf32>
    %48 = arith.divf %46, %47 : vector<1x128xf32>
    %49 = vector.extract_strided_slice %48 {offsets = [0, 0], sizes = [1, 32], strides = [1, 1]} : vector<1x128xf32> to vector<1x32xf32>
    %50 = vector.extract_strided_slice %48 {offsets = [0, 32], sizes = [1, 32], strides = [1, 1]} : vector<1x128xf32> to vector<1x32xf32>
    %51 = vector.extract_strided_slice %48 {offsets = [0, 64], sizes = [1, 32], strides = [1, 1]} : vector<1x128xf32> to vector<1x32xf32>
    %cst_12 = arith.constant 2.000000e+00 : f32
    %52 = vector.broadcast %cst_12 : f32 to vector<1x32xf32>
    %53 = arith.mulf %52, %51 : vector<1x32xf32>
    %cst_13 = arith.constant 1.000000e+00 : f32
    %54 = vector.broadcast %cst_13 : f32 to vector<1x32xf32>
    %55 = arith.subf %53, %54 : vector<1x32xf32>
    %56 = vector.extract_strided_slice %48 {offsets = [0, 96], sizes = [1, 32], strides = [1, 1]} : vector<1x128xf32> to vector<1x32xf32>
    %57 = arith.mulf %50, %38 : vector<1x32xf32>
    %58 = arith.mulf %49, %55 : vector<1x32xf32>
    %59 = arith.addf %57, %58 : vector<1x32xf32>
    %60 = math.tanh %59 : vector<1x32xf32>
    %61 = arith.mulf %56, %60 : vector<1x32xf32>
    %62 = arith.truncf %61 : vector<1x32xf32> to vector<1x32xbf16>
    %cst_14 = arith.constant dense<0.000000e+00> : vector<1x128xf32>
    %63 = tpu.matmul %62, %1, %cst_14 {dimension_numbers = #tpu.dot_dimension_numbers<[1], [0], [0], [1], [0, 0, 1, 1], [], []>} : vector<1x32xbf16>, vector<32x128xbf16>, vector<1x128xf32> -> vector<1x128xf32>
    %64 = arith.addf %12, %63 : vector<1x128xf32>
    %65 = arith.negf %64 : vector<1x128xf32>
    %66 = math.exp %65 : vector<1x128xf32>
    %cst_15 = arith.constant 1.000000e+00 : f32
    %67 = vector.broadcast %cst_15 : f32 to vector<1x128xf32>
    %68 = arith.addf %67, %66 : vector<1x128xf32>
    %69 = arith.divf %67, %68 : vector<1x128xf32>
    %70 = vector.extract_strided_slice %69 {offsets = [0, 0], sizes = [1, 32], strides = [1, 1]} : vector<1x128xf32> to vector<1x32xf32>
    %71 = vector.extract_strided_slice %69 {offsets = [0, 32], sizes = [1, 32], strides = [1, 1]} : vector<1x128xf32> to vector<1x32xf32>
    %72 = vector.extract_strided_slice %69 {offsets = [0, 64], sizes = [1, 32], strides = [1, 1]} : vector<1x128xf32> to vector<1x32xf32>
    %cst_16 = arith.constant 2.000000e+00 : f32
    %73 = vector.broadcast %cst_16 : f32 to vector<1x32xf32>
    %74 = arith.mulf %73, %72 : vector<1x32xf32>
    %cst_17 = arith.constant 1.000000e+00 : f32
    %75 = vector.broadcast %cst_17 : f32 to vector<1x32xf32>
    %76 = arith.subf %74, %75 : vector<1x32xf32>
    %77 = vector.extract_strided_slice %69 {offsets = [0, 96], sizes = [1, 32], strides = [1, 1]} : vector<1x128xf32> to vector<1x32xf32>
    %78 = arith.mulf %71, %59 : vector<1x32xf32>
    %79 = arith.mulf %70, %76 : vector<1x32xf32>
    %80 = arith.addf %78, %79 : vector<1x32xf32>
    %81 = math.tanh %80 : vector<1x32xf32>
    %82 = arith.mulf %77, %81 : vector<1x32xf32>
    %83 = arith.truncf %82 : vector<1x32xf32> to vector<1x32xbf16>
    %cst_18 = arith.constant dense<0.000000e+00> : vector<1x128xf32>
    %84 = tpu.matmul %83, %1, %cst_18 {dimension_numbers = #tpu.dot_dimension_numbers<[1], [0], [0], [1], [0, 0, 1, 1], [], []>} : vector<1x32xbf16>, vector<32x128xbf16>, vector<1x128xf32> -> vector<1x128xf32>
    %85 = arith.addf %13, %84 : vector<1x128xf32>
    %86 = arith.negf %85 : vector<1x128xf32>
    %87 = math.exp %86 : vector<1x128xf32>
    %cst_19 = arith.constant 1.000000e+00 : f32
    %88 = vector.broadcast %cst_19 : f32 to vector<1x128xf32>
    %89 = arith.addf %88, %87 : vector<1x128xf32>
    %90 = arith.divf %88, %89 : vector<1x128xf32>
    %91 = vector.extract_strided_slice %90 {offsets = [0, 0], sizes = [1, 32], strides = [1, 1]} : vector<1x128xf32> to vector<1x32xf32>
    %92 = vector.extract_strided_slice %90 {offsets = [0, 32], sizes = [1, 32], strides = [1, 1]} : vector<1x128xf32> to vector<1x32xf32>
    %93 = vector.extract_strided_slice %90 {offsets = [0, 64], sizes = [1, 32], strides = [1, 1]} : vector<1x128xf32> to vector<1x32xf32>
    %cst_20 = arith.constant 2.000000e+00 : f32
    %94 = vector.broadcast %cst_20 : f32 to vector<1x32xf32>
    %95 = arith.mulf %94, %93 : vector<1x32xf32>
    %cst_21 = arith.constant 1.000000e+00 : f32
    %96 = vector.broadcast %cst_21 : f32 to vector<1x32xf32>
    %97 = arith.subf %95, %96 : vector<1x32xf32>
    %98 = vector.extract_strided_slice %90 {offsets = [0, 96], sizes = [1, 32], strides = [1, 1]} : vector<1x128xf32> to vector<1x32xf32>
    %99 = arith.mulf %92, %80 : vector<1x32xf32>
    %100 = arith.mulf %91, %97 : vector<1x32xf32>
    %101 = arith.addf %99, %100 : vector<1x32xf32>
    %102 = math.tanh %101 : vector<1x32xf32>
    %103 = arith.mulf %98, %102 : vector<1x32xf32>
    %104 = arith.truncf %103 : vector<1x32xf32> to vector<1x32xbf16>
    %cst_22 = arith.constant dense<0.000000e+00> : vector<1x128xf32>
    %105 = tpu.matmul %104, %1, %cst_22 {dimension_numbers = #tpu.dot_dimension_numbers<[1], [0], [0], [1], [0, 0, 1, 1], [], []>} : vector<1x32xbf16>, vector<32x128xbf16>, vector<1x128xf32> -> vector<1x128xf32>
    %106 = arith.addf %14, %105 : vector<1x128xf32>
    %107 = arith.negf %106 : vector<1x128xf32>
    %108 = math.exp %107 : vector<1x128xf32>
    %cst_23 = arith.constant 1.000000e+00 : f32
    %109 = vector.broadcast %cst_23 : f32 to vector<1x128xf32>
    %110 = arith.addf %109, %108 : vector<1x128xf32>
    %111 = arith.divf %109, %110 : vector<1x128xf32>
    %112 = vector.extract_strided_slice %111 {offsets = [0, 0], sizes = [1, 32], strides = [1, 1]} : vector<1x128xf32> to vector<1x32xf32>
    %113 = vector.extract_strided_slice %111 {offsets = [0, 32], sizes = [1, 32], strides = [1, 1]} : vector<1x128xf32> to vector<1x32xf32>
    %114 = vector.extract_strided_slice %111 {offsets = [0, 64], sizes = [1, 32], strides = [1, 1]} : vector<1x128xf32> to vector<1x32xf32>
    %cst_24 = arith.constant 2.000000e+00 : f32
    %115 = vector.broadcast %cst_24 : f32 to vector<1x32xf32>
    %116 = arith.mulf %115, %114 : vector<1x32xf32>
    %cst_25 = arith.constant 1.000000e+00 : f32
    %117 = vector.broadcast %cst_25 : f32 to vector<1x32xf32>
    %118 = arith.subf %116, %117 : vector<1x32xf32>
    %119 = vector.extract_strided_slice %111 {offsets = [0, 96], sizes = [1, 32], strides = [1, 1]} : vector<1x128xf32> to vector<1x32xf32>
    %120 = arith.mulf %113, %101 : vector<1x32xf32>
    %121 = arith.mulf %112, %118 : vector<1x32xf32>
    %122 = arith.addf %120, %121 : vector<1x32xf32>
    %123 = math.tanh %122 : vector<1x32xf32>
    %124 = arith.mulf %119, %123 : vector<1x32xf32>
    %125 = arith.truncf %124 : vector<1x32xf32> to vector<1x32xbf16>
    %cst_26 = arith.constant dense<0.000000e+00> : vector<1x128xf32>
    %126 = tpu.matmul %125, %1, %cst_26 {dimension_numbers = #tpu.dot_dimension_numbers<[1], [0], [0], [1], [0, 0, 1, 1], [], []>} : vector<1x32xbf16>, vector<32x128xbf16>, vector<1x128xf32> -> vector<1x128xf32>
    %127 = arith.addf %15, %126 : vector<1x128xf32>
    %128 = arith.negf %127 : vector<1x128xf32>
    %129 = math.exp %128 : vector<1x128xf32>
    %cst_27 = arith.constant 1.000000e+00 : f32
    %130 = vector.broadcast %cst_27 : f32 to vector<1x128xf32>
    %131 = arith.addf %130, %129 : vector<1x128xf32>
    %132 = arith.divf %130, %131 : vector<1x128xf32>
    %133 = vector.extract_strided_slice %132 {offsets = [0, 0], sizes = [1, 32], strides = [1, 1]} : vector<1x128xf32> to vector<1x32xf32>
    %134 = vector.extract_strided_slice %132 {offsets = [0, 32], sizes = [1, 32], strides = [1, 1]} : vector<1x128xf32> to vector<1x32xf32>
    %135 = vector.extract_strided_slice %132 {offsets = [0, 64], sizes = [1, 32], strides = [1, 1]} : vector<1x128xf32> to vector<1x32xf32>
    %cst_28 = arith.constant 2.000000e+00 : f32
    %136 = vector.broadcast %cst_28 : f32 to vector<1x32xf32>
    %137 = arith.mulf %136, %135 : vector<1x32xf32>
    %cst_29 = arith.constant 1.000000e+00 : f32
    %138 = vector.broadcast %cst_29 : f32 to vector<1x32xf32>
    %139 = arith.subf %137, %138 : vector<1x32xf32>
    %140 = vector.extract_strided_slice %132 {offsets = [0, 96], sizes = [1, 32], strides = [1, 1]} : vector<1x128xf32> to vector<1x32xf32>
    %141 = arith.mulf %134, %122 : vector<1x32xf32>
    %142 = arith.mulf %133, %139 : vector<1x32xf32>
    %143 = arith.addf %141, %142 : vector<1x32xf32>
    %144 = math.tanh %143 : vector<1x32xf32>
    %145 = arith.mulf %140, %144 : vector<1x32xf32>
    %146 = arith.truncf %145 : vector<1x32xf32> to vector<1x32xbf16>
    %cst_30 = arith.constant dense<0.000000e+00> : vector<1x128xf32>
    %147 = tpu.matmul %146, %1, %cst_30 {dimension_numbers = #tpu.dot_dimension_numbers<[1], [0], [0], [1], [0, 0, 1, 1], [], []>} : vector<1x32xbf16>, vector<32x128xbf16>, vector<1x128xf32> -> vector<1x128xf32>
    %148 = arith.addf %16, %147 : vector<1x128xf32>
    %149 = arith.negf %148 : vector<1x128xf32>
    %150 = math.exp %149 : vector<1x128xf32>
    %cst_31 = arith.constant 1.000000e+00 : f32
    %151 = vector.broadcast %cst_31 : f32 to vector<1x128xf32>
    %152 = arith.addf %151, %150 : vector<1x128xf32>
    %153 = arith.divf %151, %152 : vector<1x128xf32>
    %154 = vector.extract_strided_slice %153 {offsets = [0, 0], sizes = [1, 32], strides = [1, 1]} : vector<1x128xf32> to vector<1x32xf32>
    %155 = vector.extract_strided_slice %153 {offsets = [0, 32], sizes = [1, 32], strides = [1, 1]} : vector<1x128xf32> to vector<1x32xf32>
    %156 = vector.extract_strided_slice %153 {offsets = [0, 64], sizes = [1, 32], strides = [1, 1]} : vector<1x128xf32> to vector<1x32xf32>
    %cst_32 = arith.constant 2.000000e+00 : f32
    %157 = vector.broadcast %cst_32 : f32 to vector<1x32xf32>
    %158 = arith.mulf %157, %156 : vector<1x32xf32>
    %cst_33 = arith.constant 1.000000e+00 : f32
    %159 = vector.broadcast %cst_33 : f32 to vector<1x32xf32>
    %160 = arith.subf %158, %159 : vector<1x32xf32>
    %161 = vector.extract_strided_slice %153 {offsets = [0, 96], sizes = [1, 32], strides = [1, 1]} : vector<1x128xf32> to vector<1x32xf32>
    %162 = arith.mulf %155, %143 : vector<1x32xf32>
    %163 = arith.mulf %154, %160 : vector<1x32xf32>
    %164 = arith.addf %162, %163 : vector<1x32xf32>
    %165 = math.tanh %164 : vector<1x32xf32>
    %166 = arith.mulf %161, %165 : vector<1x32xf32>
    %167 = arith.truncf %166 : vector<1x32xf32> to vector<1x32xbf16>
    %cst_34 = arith.constant dense<0.000000e+00> : vector<1x128xf32>
    %168 = tpu.matmul %167, %1, %cst_34 {dimension_numbers = #tpu.dot_dimension_numbers<[1], [0], [0], [1], [0, 0, 1, 1], [], []>} : vector<1x32xbf16>, vector<32x128xbf16>, vector<1x128xf32> -> vector<1x128xf32>
    %169 = arith.addf %17, %168 : vector<1x128xf32>
    %170 = arith.negf %169 : vector<1x128xf32>
    %171 = math.exp %170 : vector<1x128xf32>
    %cst_35 = arith.constant 1.000000e+00 : f32
    %172 = vector.broadcast %cst_35 : f32 to vector<1x128xf32>
    %173 = arith.addf %172, %171 : vector<1x128xf32>
    %174 = arith.divf %172, %173 : vector<1x128xf32>
    %175 = vector.extract_strided_slice %174 {offsets = [0, 0], sizes = [1, 32], strides = [1, 1]} : vector<1x128xf32> to vector<1x32xf32>
    %176 = vector.extract_strided_slice %174 {offsets = [0, 32], sizes = [1, 32], strides = [1, 1]} : vector<1x128xf32> to vector<1x32xf32>
    %177 = vector.extract_strided_slice %174 {offsets = [0, 64], sizes = [1, 32], strides = [1, 1]} : vector<1x128xf32> to vector<1x32xf32>
    %cst_36 = arith.constant 2.000000e+00 : f32
    %178 = vector.broadcast %cst_36 : f32 to vector<1x32xf32>
    %179 = arith.mulf %178, %177 : vector<1x32xf32>
    %cst_37 = arith.constant 1.000000e+00 : f32
    %180 = vector.broadcast %cst_37 : f32 to vector<1x32xf32>
    %181 = arith.subf %179, %180 : vector<1x32xf32>
    %182 = vector.extract_strided_slice %174 {offsets = [0, 96], sizes = [1, 32], strides = [1, 1]} : vector<1x128xf32> to vector<1x32xf32>
    %183 = arith.mulf %176, %164 : vector<1x32xf32>
    %184 = arith.mulf %175, %181 : vector<1x32xf32>
    %185 = arith.addf %183, %184 : vector<1x32xf32>
    %186 = math.tanh %185 : vector<1x32xf32>
    %187 = arith.mulf %182, %186 : vector<1x32xf32>
    %c34 = arith.constant 34 : index
    %c0_38 = arith.constant 0 : index
    %188 = vector.load %arg1[%c34, %c0_38] : memref<40x128xf32, #tpu.memory_space<vmem>>, vector<1x32xf32>
    %c35 = arith.constant 35 : index
    %c0_39 = arith.constant 0 : index
    %189 = vector.load %arg1[%c35, %c0_39] : memref<40x128xf32, #tpu.memory_space<vmem>>, vector<1x1xf32>
    %190 = arith.mulf %188, %187 : vector<1x32xf32>
    %cst_40 = arith.constant dense<0.000000e+00> : vector<1xf32>
    %191 = vector.multi_reduction <add>, %190, %cst_40 [1] : vector<1x32xf32> to vector<1xf32>
    %192 = vector.shape_cast %191 : vector<1xf32> to vector<1x1xf32>
    %193 = arith.addf %192, %189 : vector<1x1xf32>
    %194 = vector.shape_cast %193 : vector<1x1xf32> to vector<1x1xf32>
    %195 = vector.broadcast %194 : vector<1x1xf32> to vector<1x128xf32>
    %c0_41 = arith.constant 0 : index
    %c0_42 = arith.constant 0 : index
    %196 = vector.load %arg2[%c0_41, %c0_42] : memref<1x128xf32, #tpu.memory_space<vmem>>, vector<1x128xf32>
    tpu.vector_store %arg2[%c0_41, %c0_42], %195 {strides = array<i32>} : memref<1x128xf32, #tpu.memory_space<vmem>>, vector<1x128xf32>,
    return
  }
}

</mosaic_0001>

<llo_original>
// kernel: forward.1
$region0: #{forward.1}
  #allocation0 [shape = 'u32[]', space=smem, size = 0x4, offset = 0x4, fixed_abs, tag = 'smem constant byte address 0x4 - core index']
  #allocation1 [shape = 'u32[144,128]{1,0:T(1,128)}', space=vmem, size = 0x12000, scoped, tag = 'internal scratch']
  %s0 = inlined_call_operand.vmem [shape: f32[8,1], index: 0, kind: input, shape index: {}]
  %s1 = inlined_call_operand.hbm [shape: f32[40,128], index: 1, kind: input, shape index: {}]
  %s2 = inlined_call_operand.hbm [shape: f32[1,128], index: 2, kind: output, shape index: {}]
  %s3 = sld [smem:[#allocation0]]
  $region22: #{forward.1} parent=0
    _
  %s5 = ssub.s32 1, %s3
  %s6 = scalar_select 0, %s5, %s3
  $region1: #{forward.1} parent=0
    #allocation2 [shape = 'u8[20480]{0}', space=vmem, size = 0x5000, scoped, tag = 'input window, operand 1, single buffered']
    #allocation3 [shape = 's32[1]{0}', space=sflag, size = 0x4, scoped, tag = 'scoped memory for forward.1']
    #allocation4 [shape = 's32[1]{0}', space=sflag, size = 0x4, scoped, tag = 'scoped memory for forward.1']
    #allocation5 [shape = 'u8[512]{0}', space=vmem, size = 0x400, scoped, tag = 'output window, operand 0, single buffered']
    %7 = vsyncpa [#allocation3], 0
    %8 = vsyncpa [#allocation4], 0
    // Predicated region
    $region2: #{forward.1} parent=1 // pred_check
      _
    $region3: #{forward.1} parent=1 // pred_check_branch
      %10 = sbr.rel (0) target = $region5
    $region4: #{forward.1} parent=1 // pred_region
      _
    $region5: #{forward.1} parent=1 // pred_fallthru
      _
    // Predicated region
    $region6: #{forward.1} parent=1 // pred_check
      _
    $region7: #{forward.1} parent=1 // pred_check_branch
      %12 = sbr.rel (0) target = $region9
    $region8: #{forward.1} parent=1 // pred_region
      %s14 = ssub.s32 640, 640
      %15 = vsyncadd [#allocation3], %s14
      %s16 = sshll.u32 [#allocation2], 4
      %s17 = int_to_ptr.vmem [resolvable:$true] %s16
      %22 = dma.hbm_to_vmem [thread:$0]  %s1, 640, %s17, [#allocation3], 128, 128, 8
    $region9: #{forward.1} parent=1 // pred_fallthru
      _
    // Predicated region
    $region10: #{forward.1} parent=1 // pred_check
      _
    $region11: #{forward.1} parent=1 // pred_check_branch
      %24 = sbr.rel (0) target = $region13
    $region12: #{forward.1} parent=1 // pred_region
      %25 = dma.done [#allocation3], 640
    $region13: #{forward.1} parent=1 // pred_fallthru
      _
    %v27 = vld [vmem:[#allocation2] sm:$0xff]
    %v28 = vld [vmem:[#allocation2 + $0x8] sm:$0xff]
    %v29 = vld [vmem:[#allocation2 + $0x10] sm:$0xff]
    %v30 = vld [vmem:[#allocation2 + $0x18] sm:$0xff]
    %v31 = vpack.c.bf16 %v28, %v27
    %v32 = vpack.c.bf16 %v30, %v29
    %v33 = vld [vmem:[#allocation2 + $0x20] sm:$0x1]
    %v34 = vld [vmem:[#allocation2 + $0x21] sm:$0x1]
    %v35 = vld [vmem:[%s0] sm:$0xff]
    %37 = vset.pattern.permute.xlu0 0
    %38 = vperm.xlu0 %37, %v35
    %v39 = vpop.permute.xlu0 %38
    %v41 = vlaneseq
    %v42 = vshrl.u32 %v41, 7
    %v43 = vsub.s32 0, %v42
    %v44 = vrot.slane %v33, %v43
    %v45 = vmul.f32 %v39, %v44
    %v46 = vlaneseq
    %v47 = vshrl.u32 %v46, 7
    %v48 = vsub.s32 0, %v47
    %v49 = vrot.slane %v34, %v48
    %v50 = vadd.f32 %v45, %v49
    %vm51 = vcmask 261120
    %v53 = vsel %vm51, 0, 0
    %55 = vmatprep.subr.bf16.mxu0 0
    %56 = vmatpush1.bf16.msra.mxu0 %v31
    %57 = vmatprep.subr.bf16.mxu0 0
    %58 = vmatpush1.bf16.msra.mxu0 %v32
    %59 = vmatprep.subr.bf16.mxu0 0
    %60 = vmatpush1.bf16.msra.mxu0 0
    %61 = vmatprep.subr.bf16.mxu0 0
    %62 = vmatpush1.bf16.msra.mxu0 0
    %63 = vmatprep.subr.bf16.mxu0 0
    %64 = vmatpush1.bf16.msra.mxu0 0
    %65 = vmatprep.subr.bf16.mxu0 0
    %66 = vmatpush1.bf16.msra.mxu0 0
    %67 = vmatprep.subr.bf16.mxu0 0
    %68 = vmatpush1.bf16.msra.mxu0 0
    %69 = vmatprep.subr.bf16.mxu0 0
    %70 = vmatpush1.bf16.msra.mxu0 0
    %71 = vmatprep.subr.bf16.mxu0 0
    %72 = vmatpush1.bf16.msra.mxu0 0
    %73 = vmatprep.subr.bf16.mxu0 0
    %74 = vmatpush1.bf16.msra.mxu0 0
    %75 = vmatprep.subr.bf16.mxu0 0
    %76 = vmatpush1.bf16.msra.mxu0 0
    %77 = vmatprep.subr.bf16.mxu0 0
    %78 = vmatpush1.bf16.msra.mxu0 0
    %79 = vmatprep.subr.bf16.mxu0 0
    %80 = vmatpush1.bf16.msra.mxu0 0
    %81 = vmatprep.subr.bf16.mxu0 0
    %82 = vmatpush1.bf16.msra.mxu0 0
    %83 = vmatprep.subr.bf16.mxu0 0
    %84 = vmatpush1.bf16.msra.mxu0 0
    %85 = vmatprep.subr.bf16.mxu0 0
    %86 = vmatpush1.bf16.msra.mxu0 0
    %87 = vmatprep.mubr.bf16.mxu0 0
    %88 = vmatmul.mubr.bf16.gmra.mrb[0].mxu0 %v53
    %v89 = vpop.f32.mrb[0].mxu0
    %v90 = vadd.f32 0.0, %v89
    %v91 = vpop.f32.mrb[0].mxu0
    %v92 = vpop.f32.mrb[0].mxu0
    %v93 = vpop.f32.mrb[0].mxu0
    %94 = vdwg.mxu0
    %v95 = vadd.f32 %v50, %v90
    %v96 = vxor.u32 %v95, 2147483648
    %v97 = vmul.f32 %v96, 1.442695
    %v98 = vpow.pop %v97
    %v99 = vadd.f32 %v98, 1.0
    %v100 = vrcp.pop %v99
    %v101 = vmul.f32 1.0, %v100
    %v102 = vmul.f32 %v101, 2.0
    %v103 = vsub.f32 %v102, 1.0
    %v104 = vmul.f32 %v101, 0.0
    %106 = vrot.lane.b32.xlu0 %v103, 64
    %v107 = vpop.permute.xlu0 %106
    %v109 = vmul.f32 %v101, %v107
    %111 = vrot.lane.b32.xlu0 %v109, 32
    %v112 = vpop.permute.xlu0 %111
    %v114 = vadd.f32 %v104, %v112
    %v115 = vtanh.pop %v114
    %117 = vrot.lane.b32.xlu0 %v115, 64
    %v118 = vpop.permute.xlu0 %117
    %v120 = vmul.f32 %v101, %v118
    %v121 = vpack.c.bf16 %v120, %v120
    %123 = vrot.lane.b32.xlu0 %v121, 32
    %v124 = vpop.permute.xlu0 %123
    %v126 = vsel %vm51, %v124, 0
    %128 = vmatprep.subr.bf16.mxu0 0
    %129 = vmatpush1.bf16.msra.mxu0 %v31
    %130 = vmatprep.subr.bf16.mxu0 0
    %131 = vmatpush1.bf16.msra.mxu0 %v32
    %132 = vmatprep.subr.bf16.mxu0 0
    %133 = vmatpush1.bf16.msra.mxu0 0
    %134 = vmatprep.subr.bf16.mxu0 0
    %135 = vmatpush1.bf16.msra.mxu0 0
    %136 = vmatprep.subr.bf16.mxu0 0
    %137 = vmatpush1.bf16.msra.mxu0 0
    %138 = vmatprep.subr.bf16.mxu0 0
    %139 = vmatpush1.bf16.msra.mxu0 0
    %140 = vmatprep.subr.bf16.mxu0 0
    %141 = vmatpush1.bf16.msra.mxu0 0
    %142 = vmatprep.subr.bf16.mxu0 0
    %143 = vmatpush1.bf16.msra.mxu0 0
    %144 = vmatprep.subr.bf16.mxu0 0
    %145 = vmatpush1.bf16.msra.mxu0 0
    %146 = vmatprep.subr.bf16.mxu0 0
    %147 = vmatpush1.bf16.msra.mxu0 0
    %148 = vmatprep.subr.bf16.mxu0 0
    %149 = vmatpush1.bf16.msra.mxu0 0
    %150 = vmatprep.subr.bf16.mxu0 0
    %151 = vmatpush1.bf16.msra.mxu0 0
    %152 = vmatprep.subr.bf16.mxu0 0
    %153 = vmatpush1.bf16.msra.mxu0 0
    %154 = vmatprep.subr.bf16.mxu0 0
    %155 = vmatpush1.bf16.msra.mxu0 0
    %156 = vmatprep.subr.bf16.mxu0 0
    %157 = vmatpush1.bf16.msra.mxu0 0
    %158 = vmatprep.subr.bf16.mxu0 0
    %159 = vmatpush1.bf16.msra.mxu0 0
    %160 = vmatprep.mubr.bf16.mxu0 0
    %161 = vmatmul.mubr.bf16.gmra.mrb[0].mxu0 %v126
    %v162 = vpop.f32.mrb[0].mxu0
    %v163 = vadd.f32 0.0, %v162
    %v164 = vpop.f32.mrb[0].mxu0
    %v165 = vpop.f32.mrb[0].mxu0
    %v166 = vpop.f32.mrb[0].mxu0
    %167 = vdwg.mxu0
    %v169 = vrot.slane %v163, 7
    %v171 = vadd.f32 %v50, %v169
    %v172 = vxor.u32 %v171, 2147483648
    %v173 = vmul.f32 %v172, 1.442695
    %v174 = vpow.pop %v173
    %v175 = vadd.f32 %v174, 1.0
    %v176 = vrcp.pop %v175
    %v177 = vmul.f32 1.0, %v176
    %v178 = vmul.f32 %v177, 2.0
    %v179 = vsub.f32 %v178, 1.0
    %v181 = vrot.slane %v114, 7
    %v183 = vmul.f32 %v177, %v181
    %185 = vrot.lane.b32.xlu0 %v179, 64
    %v186 = vpop.permute.xlu0 %185
    %v188 = vmul.f32 %v177, %v186
    %190 = vrot.lane.b32.xlu0 %v188, 32
    %v191 = vpop.permute.xlu0 %190
    %v193 = vadd.f32 %v183, %v191
    %v194 = vtanh.pop %v193
    %196 = vrot.lane.b32.xlu0 %v194, 64
    %v197 = vpop.permute.xlu0 %196
    %v199 = vmul.f32 %v177, %v197
    %v200 = vpack.c.bf16 %v199, %v199
    %v202 = vshrl.u32 %v200, 16
    %204 = vrot.lane.b32.xlu0 %v202, 32
    %v205 = vpop.permute.xlu0 %204
    %v207 = vsel %vm51, %v205, 0
    %209 = vmatprep.subr.bf16.mxu0 0
    %210 = vmatpush1.bf16.msra.mxu0 %v31
    %211 = vmatprep.subr.bf16.mxu0 0
    %212 = vmatpush1.bf16.msra.mxu0 %v32
    %213 = vmatprep.subr.bf16.mxu0 0
    %214 = vmatpush1.bf16.msra.mxu0 0
    %215 = vmatprep.subr.bf16.mxu0 0
    %216 = vmatpush1.bf16.msra.mxu0 0
    %217 = vmatprep.subr.bf16.mxu0 0
    %218 = vmatpush1.bf16.msra.mxu0 0
    %219 = vmatprep.subr.bf16.mxu0 0
    %220 = vmatpush1.bf16.msra.mxu0 0
    %221 = vmatprep.subr.bf16.mxu0 0
    %222 = vmatpush1.bf16.msra.mxu0 0
    %223 = vmatprep.subr.bf16.mxu0 0
    %224 = vmatpush1.bf16.msra.mxu0 0
    %225 = vmatprep.subr.bf16.mxu0 0
    %226 = vmatpush1.bf16.msra.mxu0 0
    %227 = vmatprep.subr.bf16.mxu0 0
    %228 = vmatpush1.bf16.msra.mxu0 0
    %229 = vmatprep.subr.bf16.mxu0 0
    %230 = vmatpush1.bf16.msra.mxu0 0
    %231 = vmatprep.subr.bf16.mxu0 0
    %232 = vmatpush1.bf16.msra.mxu0 0
    %233 = vmatprep.subr.bf16.mxu0 0
    %234 = vmatpush1.bf16.msra.mxu0 0
    %235 = vmatprep.subr.bf16.mxu0 0
    %236 = vmatpush1.bf16.msra.mxu0 0
    %237 = vmatprep.subr.bf16.mxu0 0
    %238 = vmatpush1.bf16.msra.mxu0 0
    %239 = vmatprep.subr.bf16.mxu0 0
    %240 = vmatpush1.bf16.msra.mxu0 0
    %241 = vmatprep.mubr.bf16.mxu0 0
    %242 = vmatmul.mubr.bf16.gmra.mrb[0].mxu0 %v207
    %v243 = vpop.f32.mrb[0].mxu0
    %v244 = vadd.f32 0.0, %v243
    %v245 = vpop.f32.mrb[0].mxu0
    %v246 = vpop.f32.mrb[0].mxu0
    %v247 = vpop.f32.mrb[0].mxu0
    %248 = vdwg.mxu0
    %v250 = vrot.slane %v244, 6
    %v252 = vadd.f32 %v50, %v250
    %v253 = vxor.u32 %v252, 2147483648
    %v254 = vmul.f32 %v253, 1.442695
    %v255 = vpow.pop %v254
    %v256 = vadd.f32 %v255, 1.0
    %v257 = vrcp.pop %v256
    %v258 = vmul.f32 1.0, %v257
    %v259 = vmul.f32 %v258, 2.0
    %v260 = vsub.f32 %v259, 1.0
    %v262 = vrot.slane %v193, 7
    %v264 = vmul.f32 %v258, %v262
    %266 = vrot.lane.b32.xlu0 %v260, 64
    %v267 = vpop.permute.xlu0 %266
    %v269 = vmul.f32 %v258, %v267
    %271 = vrot.lane.b32.xlu0 %v269, 32
    %v272 = vpop.permute.xlu0 %271
    %v274 = vadd.f32 %v264, %v272
    %v275 = vtanh.pop %v274
    %277 = vrot.lane.b32.xlu0 %v275, 64
    %v278 = vpop.permute.xlu0 %277
    %v280 = vmul.f32 %v258, %v278
    %v281 = vpack.c.bf16 %v280, %v280
    %v283 = vrot.slane %v281, 1
    %284 = vrot.lane.b32.xlu0 %v283, 32
    %v285 = vpop.permute.xlu0 %284
    %v287 = vsel %vm51, %v285, 0
    %289 = vmatprep.subr.bf16.mxu0 0
    %290 = vmatpush1.bf16.msra.mxu0 %v31
    %291 = vmatprep.subr.bf16.mxu0 0
    %292 = vmatpush1.bf16.msra.mxu0 %v32
    %293 = vmatprep.subr.bf16.mxu0 0
    %294 = vmatpush1.bf16.msra.mxu0 0
    %295 = vmatprep.subr.bf16.mxu0 0
    %296 = vmatpush1.bf16.msra.mxu0 0
    %297 = vmatprep.subr.bf16.mxu0 0
    %298 = vmatpush1.bf16.msra.mxu0 0
    %299 = vmatprep.subr.bf16.mxu0 0
    %300 = vmatpush1.bf16.msra.mxu0 0
    %301 = vmatprep.subr.bf16.mxu0 0
    %302 = vmatpush1.bf16.msra.mxu0 0
    %303 = vmatprep.subr.bf16.mxu0 0
    %304 = vmatpush1.bf16.msra.mxu0 0
    %305 = vmatprep.subr.bf16.mxu0 0
    %306 = vmatpush1.bf16.msra.mxu0 0
    %307 = vmatprep.subr.bf16.mxu0 0
    %308 = vmatpush1.bf16.msra.mxu0 0
    %309 = vmatprep.subr.bf16.mxu0 0
    %310 = vmatpush1.bf16.msra.mxu0 0
    %311 = vmatprep.subr.bf16.mxu0 0
    %312 = vmatpush1.bf16.msra.mxu0 0
    %313 = vmatprep.subr.bf16.mxu0 0
    %314 = vmatpush1.bf16.msra.mxu0 0
    %315 = vmatprep.subr.bf16.mxu0 0
    %316 = vmatpush1.bf16.msra.mxu0 0
    %317 = vmatprep.subr.bf16.mxu0 0
    %318 = vmatpush1.bf16.msra.mxu0 0
    %319 = vmatprep.subr.bf16.mxu0 0
    %320 = vmatpush1.bf16.msra.mxu0 0
    %321 = vmatprep.mubr.bf16.mxu0 0
    %322 = vmatmul.mubr.bf16.gmra.mrb[0].mxu0 %v287
    %v323 = vpop.f32.mrb[0].mxu0
    %v324 = vadd.f32 0.0, %v323
    %v325 = vpop.f32.mrb[0].mxu0
    %v326 = vpop.f32.mrb[0].mxu0
    %v327 = vpop.f32.mrb[0].mxu0
    %328 = vdwg.mxu0
    %v330 = vrot.slane %v324, 5
    %v332 = vadd.f32 %v50, %v330
    %v333 = vxor.u32 %v332, 2147483648
    %v334 = vmul.f32 %v333, 1.442695
    %v335 = vpow.pop %v334
    %v336 = vadd.f32 %v335, 1.0
    %v337 = vrcp.pop %v336
    %v338 = vmul.f32 1.0, %v337
    %v339 = vmul.f32 %v338, 2.0
    %v340 = vsub.f32 %v339, 1.0
    %v342 = vrot.slane %v274, 7
    %v344 = vmul.f32 %v338, %v342
    %346 = vrot.lane.b32.xlu0 %v340, 64
    %v347 = vpop.permute.xlu0 %346
    %v349 = vmul.f32 %v338, %v347
    %351 = vrot.lane.b32.xlu0 %v349, 32
    %v352 = vpop.permute.xlu0 %351
    %v354 = vadd.f32 %v344, %v352
    %v355 = vtanh.pop %v354
    %357 = vrot.lane.b32.xlu0 %v355, 64
    %v358 = vpop.permute.xlu0 %357
    %v360 = vmul.f32 %v338, %v358
    %v361 = vpack.c.bf16 %v360, %v360
    %v363 = vshrl.u32 %v361, 16
    %v365 = vrot.slane %v363, 1
    %366 = vrot.lane.b32.xlu0 %v365, 32
    %v367 = vpop.permute.xlu0 %366
    %v369 = vsel %vm51, %v367, 0
    %371 = vmatprep.subr.bf16.mxu0 0
    %372 = vmatpush1.bf16.msra.mxu0 %v31
    %373 = vmatprep.subr.bf16.mxu0 0
    %374 = vmatpush1.bf16.msra.mxu0 %v32
    %375 = vmatprep.subr.bf16.mxu0 0
    %376 = vmatpush1.bf16.msra.mxu0 0
    %377 = vmatprep.subr.bf16.mxu0 0
    %378 = vmatpush1.bf16.msra.mxu0 0
    %379 = vmatprep.subr.bf16.mxu0 0
    %380 = vmatpush1.bf16.msra.mxu0 0
    %381 = vmatprep.subr.bf16.mxu0 0
    %382 = vmatpush1.bf16.msra.mxu0 0
    %383 = vmatprep.subr.bf16.mxu0 0
    %384 = vmatpush1.bf16.msra.mxu0 0
    %385 = vmatprep.subr.bf16.mxu0 0
    %386 = vmatpush1.bf16.msra.mxu0 0
    %387 = vmatprep.subr.bf16.mxu0 0
    %388 = vmatpush1.bf16.msra.mxu0 0
    %389 = vmatprep.subr.bf16.mxu0 0
    %390 = vmatpush1.bf16.msra.mxu0 0
    %391 = vmatprep.subr.bf16.mxu0 0
    %392 = vmatpush1.bf16.msra.mxu0 0
    %393 = vmatprep.subr.bf16.mxu0 0
    %394 = vmatpush1.bf16.msra.mxu0 0
    %395 = vmatprep.subr.bf16.mxu0 0
    %396 = vmatpush1.bf16.msra.mxu0 0
    %397 = vmatprep.subr.bf16.mxu0 0
    %398 = vmatpush1.bf16.msra.mxu0 0
    %399 = vmatprep.subr.bf16.mxu0 0
    %400 = vmatpush1.bf16.msra.mxu0 0
    %401 = vmatprep.subr.bf16.mxu0 0
    %402 = vmatpush1.bf16.msra.mxu0 0
    %403 = vmatprep.mubr.bf16.mxu0 0
    %404 = vmatmul.mubr.bf16.gmra.mrb[0].mxu0 %v369
    %v405 = vpop.f32.mrb[0].mxu0
    %v406 = vadd.f32 0.0, %v405
    %v407 = vpop.f32.mrb[0].mxu0
    %v408 = vpop.f32.mrb[0].mxu0
    %v409 = vpop.f32.mrb[0].mxu0
    %410 = vdwg.mxu0
    %v412 = vrot.slane %v406, 4
    %v414 = vadd.f32 %v50, %v412
    %v415 = vxor.u32 %v414, 2147483648
    %v416 = vmul.f32 %v415, 1.442695
    %v417 = vpow.pop %v416
    %v418 = vadd.f32 %v417, 1.0
    %v419 = vrcp.pop %v418
    %v420 = vmul.f32 1.0, %v419
    %v421 = vmul.f32 %v420, 2.0
    %v422 = vsub.f32 %v421, 1.0
    %v424 = vrot.slane %v354, 7
    %v426 = vmul.f32 %v420, %v424
    %428 = vrot.lane.b32.xlu0 %v422, 64
    %v429 = vpop.permute.xlu0 %428
    %v431 = vmul.f32 %v420, %v429
    %433 = vrot.lane.b32.xlu0 %v431, 32
    %v434 = vpop.permute.xlu0 %433
    %v436 = vadd.f32 %v426, %v434
    %v437 = vtanh.pop %v436
    %439 = vrot.lane.b32.xlu0 %v437, 64
    %v440 = vpop.permute.xlu0 %439
    %v442 = vmul.f32 %v420, %v440
    %v443 = vpack.c.bf16 %v442, %v442
    %v445 = vrot.slane %v443, 2
    %446 = vrot.lane.b32.xlu0 %v445, 32
    %v447 = vpop.permute.xlu0 %446
    %v449 = vsel %vm51, %v447, 0
    %451 = vmatprep.subr.bf16.mxu0 0
    %452 = vmatpush1.bf16.msra.mxu0 %v31
    %453 = vmatprep.subr.bf16.mxu0 0
    %454 = vmatpush1.bf16.msra.mxu0 %v32
    %455 = vmatprep.subr.bf16.mxu0 0
    %456 = vmatpush1.bf16.msra.mxu0 0
    %457 = vmatprep.subr.bf16.mxu0 0
    %458 = vmatpush1.bf16.msra.mxu0 0
    %459 = vmatprep.subr.bf16.mxu0 0
    %460 = vmatpush1.bf16.msra.mxu0 0
    %461 = vmatprep.subr.bf16.mxu0 0
    %462 = vmatpush1.bf16.msra.mxu0 0
    %463 = vmatprep.subr.bf16.mxu0 0
    %464 = vmatpush1.bf16.msra.mxu0 0
    %465 = vmatprep.subr.bf16.mxu0 0
    %466 = vmatpush1.bf16.msra.mxu0 0
    %467 = vmatprep.subr.bf16.mxu0 0
    %468 = vmatpush1.bf16.msra.mxu0 0
    %469 = vmatprep.subr.bf16.mxu0 0
    %470 = vmatpush1.bf16.msra.mxu0 0
    %471 = vmatprep.subr.bf16.mxu0 0
    %472 = vmatpush1.bf16.msra.mxu0 0
    %473 = vmatprep.subr.bf16.mxu0 0
    %474 = vmatpush1.bf16.msra.mxu0 0
    %475 = vmatprep.subr.bf16.mxu0 0
    %476 = vmatpush1.bf16.msra.mxu0 0
    %477 = vmatprep.subr.bf16.mxu0 0
    %478 = vmatpush1.bf16.msra.mxu0 0
    %479 = vmatprep.subr.bf16.mxu0 0
    %480 = vmatpush1.bf16.msra.mxu0 0
    %481 = vmatprep.subr.bf16.mxu0 0
    %482 = vmatpush1.bf16.msra.mxu0 0
    %483 = vmatprep.mubr.bf16.mxu0 0
    %484 = vmatmul.mubr.bf16.gmra.mrb[0].mxu0 %v449
    %v485 = vpop.f32.mrb[0].mxu0
    %v486 = vadd.f32 0.0, %v485
    %v487 = vpop.f32.mrb[0].mxu0
    %v488 = vpop.f32.mrb[0].mxu0
    %v489 = vpop.f32.mrb[0].mxu0
    %490 = vdwg.mxu0
    %v492 = vrot.slane %v486, 3
    %v494 = vadd.f32 %v50, %v492
    %v495 = vxor.u32 %v494, 2147483648
    %v496 = vmul.f32 %v495, 1.442695
    %v497 = vpow.pop %v496
    %v498 = vadd.f32 %v497, 1.0
    %v499 = vrcp.pop %v498
    %v500 = vmul.f32 1.0, %v499
    %v501 = vmul.f32 %v500, 2.0
    %v502 = vsub.f32 %v501, 1.0
    %v504 = vrot.slane %v436, 7
    %v506 = vmul.f32 %v500, %v504
    %508 = vrot.lane.b32.xlu0 %v502, 64
    %v509 = vpop.permute.xlu0 %508
    %v511 = vmul.f32 %v500, %v509
    %513 = vrot.lane.b32.xlu0 %v511, 32
    %v514 = vpop.permute.xlu0 %513
    %v516 = vadd.f32 %v506, %v514
    %v517 = vtanh.pop %v516
    %519 = vrot.lane.b32.xlu0 %v517, 64
    %v520 = vpop.permute.xlu0 %519
    %v522 = vmul.f32 %v500, %v520
    %v523 = vpack.c.bf16 %v522, %v522
    %v525 = vshrl.u32 %v523, 16
    %v527 = vrot.slane %v525, 2
    %528 = vrot.lane.b32.xlu0 %v527, 32
    %v529 = vpop.permute.xlu0 %528
    %v531 = vsel %vm51, %v529, 0
    %533 = vmatprep.subr.bf16.mxu0 0
    %534 = vmatpush1.bf16.msra.mxu0 %v31
    %535 = vmatprep.subr.bf16.mxu0 0
    %536 = vmatpush1.bf16.msra.mxu0 %v32
    %537 = vmatprep.subr.bf16.mxu0 0
    %538 = vmatpush1.bf16.msra.mxu0 0
    %539 = vmatprep.subr.bf16.mxu0 0
    %540 = vmatpush1.bf16.msra.mxu0 0
    %541 = vmatprep.subr.bf16.mxu0 0
    %542 = vmatpush1.bf16.msra.mxu0 0
    %543 = vmatprep.subr.bf16.mxu0 0
    %544 = vmatpush1.bf16.msra.mxu0 0
    %545 = vmatprep.subr.bf16.mxu0 0
    %546 = vmatpush1.bf16.msra.mxu0 0
    %547 = vmatprep.subr.bf16.mxu0 0
    %548 = vmatpush1.bf16.msra.mxu0 0
    %549 = vmatprep.subr.bf16.mxu0 0
    %550 = vmatpush1.bf16.msra.mxu0 0
    %551 = vmatprep.subr.bf16.mxu0 0
    %552 = vmatpush1.bf16.msra.mxu0 0
    %553 = vmatprep.subr.bf16.mxu0 0
    %554 = vmatpush1.bf16.msra.mxu0 0
    %555 = vmatprep.subr.bf16.mxu0 0
    %556 = vmatpush1.bf16.msra.mxu0 0
    %557 = vmatprep.subr.bf16.mxu0 0
    %558 = vmatpush1.bf16.msra.mxu0 0
    %559 = vmatprep.subr.bf16.mxu0 0
    %560 = vmatpush1.bf16.msra.mxu0 0
    %561 = vmatprep.subr.bf16.mxu0 0
    %562 = vmatpush1.bf16.msra.mxu0 0
    %563 = vmatprep.subr.bf16.mxu0 0
    %564 = vmatpush1.bf16.msra.mxu0 0
    %565 = vmatprep.mubr.bf16.mxu0 0
    %566 = vmatmul.mubr.bf16.gmra.mrb[0].mxu0 %v531
    %v567 = vpop.f32.mrb[0].mxu0
    %v568 = vadd.f32 0.0, %v567
    %v569 = vpop.f32.mrb[0].mxu0
    %v570 = vpop.f32.mrb[0].mxu0
    %v571 = vpop.f32.mrb[0].mxu0
    %572 = vdwg.mxu0
    %v574 = vrot.slane %v568, 2
    %v576 = vadd.f32 %v50, %v574
    %v577 = vxor.u32 %v576, 2147483648
    %v578 = vmul.f32 %v577, 1.442695
    %v579 = vpow.pop %v578
    %v580 = vadd.f32 %v579, 1.0
    %v581 = vrcp.pop %v580
    %v582 = vmul.f32 1.0, %v581
    %v583 = vmul.f32 %v582, 2.0
    %v584 = vsub.f32 %v583, 1.0
    %v586 = vrot.slane %v516, 7
    %v588 = vmul.f32 %v582, %v586
    %590 = vrot.lane.b32.xlu0 %v584, 64
    %v591 = vpop.permute.xlu0 %590
    %v593 = vmul.f32 %v582, %v591
    %595 = vrot.lane.b32.xlu0 %v593, 32
    %v596 = vpop.permute.xlu0 %595
    %v598 = vadd.f32 %v588, %v596
    %v599 = vtanh.pop %v598
    %601 = vrot.lane.b32.xlu0 %v599, 64
    %v602 = vpop.permute.xlu0 %601
    %v604 = vmul.f32 %v582, %v602
    %v605 = vpack.c.bf16 %v604, %v604
    %v607 = vrot.slane %v605, 3
    %608 = vrot.lane.b32.xlu0 %v607, 32
    %v609 = vpop.permute.xlu0 %608
    %v611 = vsel %vm51, %v609, 0
    %613 = vmatprep.subr.bf16.mxu0 0
    %614 = vmatpush1.bf16.msra.mxu0 %v31
    %615 = vmatprep.subr.bf16.mxu0 0
    %616 = vmatpush1.bf16.msra.mxu0 %v32
    %617 = vmatprep.subr.bf16.mxu0 0
    %618 = vmatpush1.bf16.msra.mxu0 0
    %619 = vmatprep.subr.bf16.mxu0 0
    %620 = vmatpush1.bf16.msra.mxu0 0
    %621 = vmatprep.subr.bf16.mxu0 0
    %622 = vmatpush1.bf16.msra.mxu0 0
    %623 = vmatprep.subr.bf16.mxu0 0
    %624 = vmatpush1.bf16.msra.mxu0 0
    %625 = vmatprep.subr.bf16.mxu0 0
    %626 = vmatpush1.bf16.msra.mxu0 0
    %627 = vmatprep.subr.bf16.mxu0 0
    %628 = vmatpush1.bf16.msra.mxu0 0
    %629 = vmatprep.subr.bf16.mxu0 0
    %630 = vmatpush1.bf16.msra.mxu0 0
    %631 = vmatprep.subr.bf16.mxu0 0
    %632 = vmatpush1.bf16.msra.mxu0 0
    %633 = vmatprep.subr.bf16.mxu0 0
    %634 = vmatpush1.bf16.msra.mxu0 0
    %635 = vmatprep.subr.bf16.mxu0 0
    %636 = vmatpush1.bf16.msra.mxu0 0
    %637 = vmatprep.subr.bf16.mxu0 0
    %638 = vmatpush1.bf16.msra.mxu0 0
    %639 = vmatprep.subr.bf16.mxu0 0
    %640 = vmatpush1.bf16.msra.mxu0 0
    %641 = vmatprep.subr.bf16.mxu0 0
    %642 = vmatpush1.bf16.msra.mxu0 0
    %643 = vmatprep.subr.bf16.mxu0 0
    %644 = vmatpush1.bf16.msra.mxu0 0
    %645 = vmatprep.mubr.bf16.mxu0 0
    %646 = vmatmul.mubr.bf16.gmra.mrb[0].mxu0 %v611
    %v647 = vpop.f32.mrb[0].mxu0
    %v648 = vadd.f32 0.0, %v647
    %v649 = vpop.f32.mrb[0].mxu0
    %v650 = vpop.f32.mrb[0].mxu0
    %v651 = vpop.f32.mrb[0].mxu0
    %652 = vdwg.mxu0
    %v654 = vrot.slane %v648, 1
    %v656 = vadd.f32 %v50, %v654
    %v657 = vxor.u32 %v656, 2147483648
    %v658 = vmul.f32 %v657, 1.442695
    %v659 = vpow.pop %v658
    %v660 = vadd.f32 %v659, 1.0
    %v661 = vrcp.pop %v660
    %v662 = vmul.f32 1.0, %v661
    %v663 = vmul.f32 %v662, 2.0
    %v664 = vsub.f32 %v663, 1.0
    %v666 = vrot.slane %v598, 7
    %v668 = vmul.f32 %v662, %v666
    %670 = vrot.lane.b32.xlu0 %v664, 64
    %v671 = vpop.permute.xlu0 %670
    %v673 = vmul.f32 %v662, %v671
    %675 = vrot.lane.b32.xlu0 %v673, 32
    %v676 = vpop.permute.xlu0 %675
    %v678 = vadd.f32 %v668, %v676
    %v679 = vtanh.pop %v678
    %681 = vrot.lane.b32.xlu0 %v679, 64
    %v682 = vpop.permute.xlu0 %681
    %v684 = vmul.f32 %v662, %v682
    %v685 = vld [vmem:[#allocation2 + $0x22] sm:$0x1]
    %v686 = vld [vmem:[#allocation2 + $0x23] sm:$0x1]
    %v688 = vrot.slane %v684, 7
    %689 = vrot.lane.b32.xlu0 %v688, 32
    %v690 = vpop.permute.xlu0 %689
    %v692 = vmul.f32 %v685, %v690
    %vm693 = vcmask 253952
    %v694 = vsel %vm693, %v692, 0.0
    %695 = vadd.xlane.f32.xlu0 %v694
    %v696 = vpop.xlane.xlu0 %695
    %v697 = vadd.f32 %v696, %v686
    %699 = vset.pattern.permute.xlu0 0
    %700 = vperm.xlu0 %699, %v697
    %v701 = vpop.permute.xlu0 %700
    %703 = vst [vmem:[#allocation5] sm:$0x1] %v701
    // Predicated region
    $region14: #{forward.1} parent=1 // pred_check
      _
    $region15: #{forward.1} parent=1 // pred_check_branch
      %705 = sbr.rel (0) target = $region17
    $region16: #{forward.1} parent=1 // pred_region
      %s707 = ssub.s32 16, 16
      %708 = vsyncadd [#allocation4], %s707
      %s710 = sshll.u32 [#allocation5], 4
      %s711 = int_to_ptr.vmem [resolvable:$true] %s710
      %713 = dma.vmem_to_hbm [thread:$0]  %s711, 16, %s2, [#allocation4]
    $region17: #{forward.1} parent=1 // pred_fallthru
      _
    // Predicated region
    $region18: #{forward.1} parent=1 // pred_check
      _
    $region19: #{forward.1} parent=1 // pred_check_branch
      %715 = sbr.rel (0) target = $region21
    $region20: #{forward.1} parent=1 // pred_region
      %716 = dma.done [#allocation4], 16
    $region21: #{forward.1} parent=1 // pred_fallthru
      _
    %717 = vsyncpa [#allocation3], 1
    %718 = vsyncpa [#allocation4], 1

</llo_original>
